<compile_context>
chip_gen: v7x
topology: tpu7x:2x2x1
jax: 0.10.0
libtpu: 0.0.40
codegen_flags: <defaults>
</compile_context>

<pallas_src>
import functools

import jax
import jax.numpy as jnp
from jax.experimental import pallas as pl
from jax.experimental.pallas import tpu as pltpu


# ----------------------------- helpers --------------------------------------
def _round_up(n, m):
    return (n + m - 1) // m * m


@functools.lru_cache(maxsize=None)
def _vmem_limit_bytes():
    # Generation-aware scoped-VMEM budget: ~75% of physical VMEM, capped at 96 MiB
    # (v5e/v6e: 128 MiB physical -> 96 MiB budget; v7x: 64 MiB physical -> 48 MiB).
    try:
        cap = int(getattr(pltpu.get_tpu_info(), "vmem_capacity_bytes", 0)) or (128 << 20)
    except Exception:
        cap = 64 << 20
    return max(32 << 20, min(cap * 3 // 4, 96 << 20))


def _row_align(dtype):
    # bf16 packs 16 sublanes per vreg; f32 packs 8. Align row tiles accordingly.
    return 16 if jnp.dtype(dtype).itemsize <= 2 else 8


def _pad_rows(x, n_pad):
    n = x.shape[0]
    if n_pad == n:
        return x
    return jnp.pad(x, ((0, n_pad - n), (0, 0)))


def _resize_bilinear_nhwc(x, size):
    # matches F.interpolate(mode='bilinear', align_corners=False) for upsampling
    b, _, _, c = x.shape
    return jax.image.resize(x, (b,) + tuple(size) + (c,), method='bilinear')


# ----------------------------- Pallas kernels -------------------------------
def _linear_kernel(x_ref, wt_ref, b_ref, o_ref, *, relu):
    # o = x @ Wt + b ; Wt is pre-transposed to [Cin, Cout] (no .T in the kernel).
    acc = jnp.dot(x_ref[...], wt_ref[...], preferred_element_type=jnp.float32)
    acc = acc + b_ref[...]                     # bias/ReLU epilogue kept in f32 (v5e)
    if relu:
        acc = jnp.maximum(acc, 0.0)
    o_ref[...] = acc.astype(o_ref.dtype)


def linear_pallas(x, wt, b, relu=False, tile=1024, compute_dtype=None, out_dtype=None):
    """x: [N, Cin]; wt: [Cin, Cout] (pre-transposed); b: [1, Cout] f32 -> [N, Cout].
    compute_dtype=jnp.bfloat16 halves HBM/activation streaming; f32 accumulation."""
    n, cin = x.shape
    cout = wt.shape[1]
    out_dtype = out_dtype or x.dtype
    if compute_dtype is not None:
        x = x.astype(compute_dtype)
        wt = wt.astype(compute_dtype)
    align = _row_align(x.dtype)
    tn = min(tile, _round_up(n, align))
    n_pad = _round_up(n, tn)
    xp = _pad_rows(x, n_pad)
    out = pl.pallas_call(
        functools.partial(_linear_kernel, relu=relu),
        out_shape=jax.ShapeDtypeStruct((n_pad, cout), out_dtype),
        grid=(n_pad // tn,),
        in_specs=[
            pl.BlockSpec((tn, cin), lambda i: (i, 0)),
            pl.BlockSpec((cin, cout), lambda i: (0, 0)),
            pl.BlockSpec((1, cout), lambda i: (0, 0)),
        ],
        out_specs=pl.BlockSpec((tn, cout), lambda i: (i, 0)),
        compiler_params=pltpu.CompilerParams(
            dimension_semantics=("parallel",),
            vmem_limit_bytes=_vmem_limit_bytes()),
    )(xp, wt, b)
    return out[:n]


def _mlp3_kernel(x_ref, w1_ref, b1_ref, w2_ref, b2_ref, w3_ref, b3_ref, o_ref):
    # MLP(num_layers=3): ReLU after layers 0 and 1, linear output (no sigmoid).
    # Weights arrive pre-transposed [Cin, Cout]; accumulation + epilogue in f32;
    # inter-layer activations are downcast to the (bf16) weight dtype.
    h = jnp.dot(x_ref[...], w1_ref[...], preferred_element_type=jnp.float32) + b1_ref[...]
    h = jnp.maximum(h, 0.0).astype(w2_ref.dtype)
    h = jnp.dot(h, w2_ref[...], preferred_element_type=jnp.float32) + b2_ref[...]
    h = jnp.maximum(h, 0.0).astype(w3_ref.dtype)
    h = jnp.dot(h, w3_ref[...], preferred_element_type=jnp.float32) + b3_ref[...]
    o_ref[...] = h.astype(o_ref.dtype)
    # TODO(synk): for fully lane-dense stores emit the 9-channel output transposed
    # ([cout, tn]) and fix the layout up in the wrapper.


def mlp3_pallas(x, params, tile=1024, compute_dtype=None, out_dtype=None):
    """Fused 3-layer MLP. x: [N, Cin]; params: ((w1t,b1),(w2t,b2),(w3t,b3)) with
    weights pre-transposed to [Cin, Cout] and biases as [1, Cout] f32."""
    (w1t, b1), (w2t, b2), (w3t, b3) = params
    n, cin = x.shape
    hid1, hid2, cout = w1t.shape[1], w2t.shape[1], w3t.shape[1]
    out_dtype = out_dtype or x.dtype
    if compute_dtype is not None:
        x = x.astype(compute_dtype)
        w1t, w2t, w3t = (w.astype(compute_dtype) for w in (w1t, w2t, w3t))
    align = _row_align(x.dtype)
    tn = min(tile, _round_up(n, align))
    n_pad = _round_up(n, tn)
    xp = _pad_rows(x, n_pad)
    out = pl.pallas_call(
        _mlp3_kernel,
        out_shape=jax.ShapeDtypeStruct((n_pad, cout), out_dtype),
        grid=(n_pad // tn,),
        in_specs=[
            pl.BlockSpec((tn, cin), lambda i: (i, 0)),
            pl.BlockSpec((cin, hid1), lambda i: (0, 0)),
            pl.BlockSpec((1, hid1), lambda i: (0, 0)),
            pl.BlockSpec((hid1, hid2), lambda i: (0, 0)),
            pl.BlockSpec((1, hid2), lambda i: (0, 0)),
            pl.BlockSpec((hid2, cout), lambda i: (0, 0)),
            pl.BlockSpec((1, cout), lambda i: (0, 0)),
        ],
        out_specs=pl.BlockSpec((tn, cout), lambda i: (i, 0)),
        compiler_params=pltpu.CompilerParams(
            dimension_semantics=("parallel",),
            vmem_limit_bytes=_vmem_limit_bytes()),
    )(xp, w1t, b1, w2t, b2, w3t, b3)
    return out[:n]


def _conv3x3_kernel(x_hbm, w_ref, b_ref, o_ref, buf, sem,
                    *, th, wp, w_img, cout, n_blocks, hp2):
    # Halo'd-row-tile 3x3 conv (stride 1, pad 1) over one batch element:
    #   * grid = (B,) 'parallel' (megacore-friendly); the row-tile loop is inside
    #     the kernel so the halo DMA can be DOUBLE-BUFFERED (prefetch j+1 while
    #     computing j) without cross-grid-step assumptions.
    #   * each of the 9 tap matmuls runs over the FULL padded-width tile
    #     ([ (th+2)*(W+2), Cin ] @ [Cin, Cout], ~6% extra FLOPs) and only the tiny
    #     [*, Cout] result is shifted before accumulation — the wide input is
    #     never sliced/copied per tap, and the wrapped/out-of-window rows only
    #     land in padding positions that are discarded on extraction.
    bi = pl.program_id(0)
    n2 = (th + 2) * wp

    def issue(j, slot):
        start = (bi * hp2 + j * th) * wp
        pltpu.make_async_copy(x_hbm.at[pl.ds(start, n2)], buf.at[slot],
                              sem.at[slot]).start()

    issue(0, 0)

    @pl.loop(0, n_blocks)
    def _(j):
        slot = j & 1
        pltpu.make_async_copy(x_hbm.at[pl.ds(0, n2)], buf.at[slot],
                              sem.at[slot]).wait()

        @pl.when(j + 1 < n_blocks)
        def _():
            issue(j + 1, 1 - slot)

        full = buf[slot]                       # [(th+2)*wp, Cin], aligned loads only
        acc = jnp.zeros((n2, cout), jnp.float32)
        for kh in range(3):
            for kw in range(3):
                off = kh * wp + kw
                res = jnp.dot(full, w_ref[kh * 3 + kw],
                              preferred_element_type=jnp.float32)
                if off:
                    # shifted[p] = res[p + off]; wrap rows only touch discarded
                    # padding columns of the last row.
                    res = jnp.concatenate([res[off:], res[:off]], axis=0)
                acc = acc + res
        out_tile = acc.reshape(th + 2, wp, cout)[:th, :w_img, :] + b_ref[...]
        row0 = pl.multiple_of(j * th, th)
        o_ref[0, pl.ds(row0, th), :, :] = out_tile.astype(o_ref.dtype)


def conv3x3_nhwc(x, w_taps, b, th_max=32, compute_dtype=None, out_dtype=None):
    """3x3 conv, stride 1, padding 1, NHWC. x: [B,H,W,Cin]; w_taps: [9,Cin,Cout]
    (tap-major, prepared); b: [1,Cout] f32 -> [B,H,W,Cout]."""
    bb, h_img, w_img, cin = x.shape
    cout = w_taps.shape[-1]
    out_dtype = out_dtype or x.dtype
    if compute_dtype is not None:
        x = x.astype(compute_dtype)
        w_taps = w_taps.astype(compute_dtype)
    th = min(th_max, _round_up(h_img, 8))
    h_pad = _round_up(h_img, th)            # pad H instead of shrinking th (no th=1 cliff)
    n_blocks = h_pad // th
    wp = w_img + 2
    hp2 = h_pad + 2
    xp = jnp.pad(x, ((0, 0), (1, 1 + h_pad - h_img), (1, 1), (0, 0)))
    xp = xp.reshape(bb * hp2 * wp, cin)     # 2D token matrix -> contiguous halo DMAs
    out = pl.pallas_call(
        functools.partial(_conv3x3_kernel, th=th, wp=wp, w_img=w_img,
                          cout=cout, n_blocks=n_blocks, hp2=hp2),
        out_shape=jax.ShapeDtypeStruct((bb, h_pad, w_img, cout), out_dtype),
        grid=(bb,),
        in_specs=[
            pl.BlockSpec(memory_space=pl.ANY),                  # padded input in HBM
            pl.BlockSpec((9, cin, cout), lambda i: (0, 0, 0)),
            pl.BlockSpec((1, cout), lambda i: (0, 0)),
        ],
        out_specs=pl.BlockSpec((1, h_pad, w_img, cout), lambda i: (i, 0, 0, 0)),
        scratch_shapes=[
            pltpu.VMEM((2, (th + 2) * wp, cin), x.dtype),       # double-buffered halo
            pltpu.SemaphoreType.DMA((2,)),
        ],
        compiler_params=pltpu.CompilerParams(
            dimension_semantics=("parallel",),
            vmem_limit_bytes=_vmem_limit_bytes()),
    )(xp, w_taps, b)
    return out[:, :h_img]


def conv1x1_nhwc(x, wt, b, relu=False, tile=2048, compute_dtype=None):
    bb, h, ww, c = x.shape
    y = linear_pallas(x.reshape(bb * h * ww, c), wt, b, relu=relu, tile=tile,
                      compute_dtype=compute_dtype)
    return y.reshape(bb, h, ww, -1)


# ----------------------------- parameter preparation ------------------------
def prepare_params(p, dim, compute_dtype=jnp.bfloat16):
    """One-time inference-weight preparation (out of the per-forward wrappers):
    LoRA fold, weight transposes, seg-projection fold, bias reshapes, bf16 casts,
    and qkv cout padding to a lane multiple (unmasked stores)."""
    cd = compute_dtype

    def cast(w):
        return w if cd is None else w.astype(cd)

    def bias(v):
        return v.reshape(1, -1).astype(jnp.float32)

    prep = {'compute_dtype': cd}

    # --- _LoRA_qkv: fold adapters into the dense qkv weight -----------------
    dq = p['wb_q'] @ p['wa_q'] + p['wb_q2'] @ p['wa_q2']
    dv = p['wb_v'] @ p['wa_v'] + p['wb_v2'] @ p['wa_v2']
    w_eff = p['qkv_w'].at[:dim].add(dq).at[2 * dim:].add(dv)        # [3*dim, dim]
    cout = 3 * dim
    cout_pad = _round_up(cout, 128)                                  # lane-dense stores
    wt = jnp.zeros((dim, cout_pad), w_eff.dtype).at[:, :cout].set(w_eff.T)
    bq = jnp.zeros((1, cout_pad), jnp.float32).at[:, :cout].set(
        p['qkv_b'].astype(jnp.float32))
    prep['qkv'] = (cast(wt), bq, cout)

    # --- seg_fuse head: fuse linear_fuse∘linear_pred, split per source ------
    # (valid: the reference has no BN/ReLU between them; Dropout2d is identity in eval)
    wf = p['linear_pred_w'] @ p['linear_fuse_w']                     # [9, 96]
    bf = p['linear_pred_w'] @ p['linear_fuse_b'] + p['linear_pred_b']
    c8 = p['linear_fuse_w'].shape[0]

    def prep_mlp(mlp_p, proj, extra_bias):
        (w1, b1), (w2, b2), (w3, b3) = mlp_p
        w3p = proj @ w3                            # fold projection into layer 3
        b3p = proj @ b3 + extra_bias
        return ((cast(w1.T), bias(b1)),
                (cast(w2.T), bias(b2)),
                (cast(w3p.T), bias(b3p)))

    zero = jnp.zeros_like(bf)
    prep['mlp_src'] = prep_mlp(p['mlp_src'], wf[:, 0:c8], bf)
    prep['mlp_feat_s0'] = prep_mlp(p['mlp_feat_s0'], wf[:, c8:2 * c8], zero)
    prep['mlp_feat_s1'] = prep_mlp(p['mlp_feat_s1'], wf[:, 2 * c8:], zero)

    # --- fpn_fuse convs ------------------------------------------------------
    prep['fpn_hr0'] = (cast(p['fpn_hr0_w'].T), bias(p['fpn_hr0_b']))
    prep['fpn_hr1'] = (cast(p['fpn_hr1_w'].T), bias(p['fpn_hr1_b']))
    w33 = jnp.transpose(p['fpn_out_w'], (2, 3, 1, 0)).reshape(9, p['fpn_out_w'].shape[1],
                                                              p['fpn_out_w'].shape[0])
    prep['fpn_out'] = (cast(w33), bias(p['fpn_out_b']))
    return prep


# ----------------------------- module-level methods -------------------------
def lora_qkv(prep, x, tile=1024):
    """_LoRA_qkv.forward on windowed tokens [B, H, W, dim] -> [B, H, W, 3*dim].
    Adapters are already folded into the (lane-padded) dense weight."""
    wt, bq, cout = prep['qkv']
    b, h, w, d = x.shape
    y = linear_pallas(x.reshape(b * h * w, d), wt, bq, relu=False, tile=tile,
                      compute_dtype=prep['compute_dtype'], out_dtype=x.dtype)
    return y[:, :cout].reshape(b, h, w, cout)


def seg_fuse(prep, src, feat_s0, feat_s1, target=(640, 640)):
    """LoRA_Sam.seg_fuse (eval mode). The fused [9,96] head projection is applied
    at LOW resolution inside each branch's MLP layer 3; the [b,96,H,W] concat and
    the 32-channel full-res intermediates are never materialized."""
    cd = prep['compute_dtype']

    def branch(x_nchw, mlp_p):
        bb, c, h, w = x_nchw.shape
        x = jnp.transpose(x_nchw, (0, 2, 3, 1)).reshape(bb * h * w, c)  # NCHW->NHWC once
        y = mlp3_pallas(x, mlp_p, compute_dtype=cd, out_dtype=jnp.float32)
        return _resize_bilinear_nhwc(y.reshape(bb, h, w, 9), target)

    # TODO(synk): at production target (640x640) the three bilinear upsample+add
    # passes dominate HBM traffic; fuse upsample+accumulate into a Pallas kernel.
    out = (branch(src, prep['mlp_src'])
           + branch(feat_s0, prep['mlp_feat_s0'])
           + branch(feat_s1, prep['mlp_feat_s1']))
    return jnp.transpose(out, (0, 3, 1, 2))    # NCHW output to match PyTorch


def fpn_fuse(prep, feat, high_res_0, high_res_1, target=(640, 640)):
    """LoRA_Sam.fpn_fuse (the convs are created fresh in the PyTorch forward; here
    they use the deterministic weights in `prep`). NHWC end-to-end."""
    cd = prep['compute_dtype']
    feat_h = jnp.transpose(feat, (0, 2, 3, 1))
    hr0 = jnp.transpose(high_res_0, (0, 2, 3, 1))
    hr1 = jnp.transpose(high_res_1, (0, 2, 3, 1))
    hr0c = conv1x1_nhwc(hr0, *prep['fpn_hr0'], compute_dtype=cd)
    hr1c = conv1x1_nhwc(hr1, *prep['fpn_hr1'], compute_dtype=cd)
    feat_up = _resize_bilinear_nhwc(feat_h, hr1c.shape[1:3])
    fpn_merge_1 = feat_up + hr1c
    m1_up = _resize_bilinear_nhwc(fpn_merge_1, hr0c.shape[1:3])
    final_merge = hr0c + m1_up
    out = conv3x3_nhwc(final_merge, *prep['fpn_out'], compute_dtype=cd,
                       out_dtype=jnp.float32)
    out = _resize_bilinear_nhwc(out, target)
    return jnp.transpose(out, (0, 3, 1, 2))    # [b, 9, Ht, Wt]


# ----------------------------- parameter init -------------------------------
def init_params(key, dim=32, r=4, transformer_dim=256):
    td = transformer_dim
    keys = iter(jax.random.split(key, 64))

    def w(shape, scale=0.05):
        return scale * jax.random.normal(next(keys), shape, jnp.float32)

    p = {}
    # one LoRA-adapted attention block (qkv in_features = dim)
    p['qkv_w'] = w((3 * dim, dim))
    p['qkv_b'] = w((3 * dim,))
    for name in ['q', 'v', 'q2', 'v2']:
        p[f'wa_{name}'] = w((r, dim))
        # NOTE: reference reset_parameters() zeros the B matrices (LoRA delta = 0);
        # small nonzero values are used here so the LoRA fold is exercised.
        p[f'wb_{name}'] = w((dim, r))

    def mlp_params(cin, hid, cout):
        return ((w((hid, cin)), w((hid,))),
                (w((hid, hid)), w((hid,))),
                (w((cout, hid)), w((cout,))))

    p['mlp_src'] = mlp_params(td, td // 8, td // 8)            # 256 -> 32 -> 32
    p['mlp_feat_s0'] = mlp_params(td // 8, td // 8, td // 8)   # 32  -> 32 -> 32
    p['mlp_feat_s1'] = mlp_params(td // 4, td // 8, td // 8)   # 64  -> 32 -> 32
    p['linear_fuse_w'] = w((td // 8, td // 8 * 3))             # Conv2d(96, 32, 1)
    p['linear_fuse_b'] = w((td // 8,))
    p['linear_pred_w'] = w((9, td // 8))                       # Conv2d(32, 9, 1)
    p['linear_pred_b'] = w((9,))
    # fpn_fuse convs
    p['fpn_hr0_w'] = w((256, 32))                              # Conv2d(32, 256, 1)
    p['fpn_hr0_b'] = w((256,))
    p['fpn_hr1_w'] = w((256, 64))                              # Conv2d(64, 256, 1)
    p['fpn_hr1_b'] = w((256,))
    p['fpn_out_w'] = w((9, 256, 3, 3))                         # Conv2d(256, 9, 3, p=1)
    p['fpn_out_b'] = w((9,))
    return p


# ----------------------------- main ------------------------------------------
if __name__ == "__main__":
    key = jax.random.PRNGKey(0)
    kp, kx, k0, k1, kf = jax.random.split(key, 5)

    dim, r, td, b = 32, 4, 256, 2
    raw_params = init_params(kp, dim=dim, r=r, transformer_dim=td)
    # one-time weight prep: LoRA fold, transposes, seg-projection fold, bf16 cast
    params = prepare_params(raw_params, dim=dim, compute_dtype=jnp.bfloat16)

    # LoRA-adapted qkv on windowed tokens (SAM2 hiera attention layout [B,H,W,C])
    x_tokens = jax.random.normal(kx, (2, 8, 8, dim), jnp.float32)
    qkv = lora_qkv(params, x_tokens)

    # synthetic SAM image-encoder outputs (NCHW, like PyTorch):
    feat = jax.random.normal(kf, (b, 256, 8, 8), jnp.float32)         # vision_features
    high_res_0 = jax.random.normal(k0, (b, 32, 32, 32), jnp.float32)  # backbone_fpn[0]
    high_res_1 = jax.random.normal(k1, (b, 64, 16, 16), jnp.float32)  # backbone_fpn[1]

    target = (64, 64)  # reference upsamples to (640, 640); reduced for the small test
    out_seg = seg_fuse(params, feat, high_res_0, high_res_1, target=target)
    out_fpn = fpn_fuse(params, feat, high_res_0, high_res_1, target=target)
    prototype_loss = jnp.float32(0.0)  # eval-mode branch of forward()
    kl_loss = jnp.float32(0.0)

    jax.block_until_ready((qkv, out_seg, out_fpn))
    assert qkv.shape == (2, 8, 8, 3 * dim)
    assert out_seg.shape == (b, 9) + target
    assert out_fpn.shape == (b, 9) + target
    print("KERNEL_OK")
</pallas_src>

<mosaic_0001>
module attributes {stable_mosaic.version = 11 : i64} {
  func.func @_linear_kernel(%arg0: i32, %arg1: memref<128x32xbf16, #tpu.memory_space<vmem>>, %arg2: memref<32x128xbf16, #tpu.memory_space<vmem>>, %arg3: memref<1x128xf32, #tpu.memory_space<vmem>>, %arg4: memref<128x128xf32, #tpu.memory_space<vmem>>) attributes {dimension_semantics = [#tpu.dimension_semantics<parallel>], iteration_bounds = array<i64: 1>, scalar_prefetch = 0 : i64, scratch_operands = 0 : i64, tpu.core_type = #tpu.core_type<tc>, window_params = [{transform_indices = @transform_0, window_bounds = array<i64: 128, 32>}, {pipeline_mode = #tpu.pipeline_mode<synchronous>, transform_indices = @transform_1, window_bounds = array<i64: 32, 128>}, {pipeline_mode = #tpu.pipeline_mode<synchronous>, transform_indices = @transform_2, window_bounds = array<i64: 1, 128>}, {transform_indices = @transform_3, window_bounds = array<i64: 128, 128>}]} {
    %c0 = arith.constant 0 : index
    %c0_0 = arith.constant 0 : index
    %0 = vector.load %arg1[%c0, %c0_0] : memref<128x32xbf16, #tpu.memory_space<vmem>>, vector<128x32xbf16>
    %c0_1 = arith.constant 0 : index
    %c0_2 = arith.constant 0 : index
    %1 = vector.load %arg2[%c0_1, %c0_2] : memref<32x128xbf16, #tpu.memory_space<vmem>>, vector<32x128xbf16>
    %cst = arith.constant dense<0.000000e+00> : vector<128x128xf32>
    %2 = tpu.matmul %0, %1, %cst {dimension_numbers = #tpu.dot_dimension_numbers<[1], [0], [0], [1], [0, 0, 1, 1], [], []>} : vector<128x32xbf16>, vector<32x128xbf16>, vector<128x128xf32> -> vector<128x128xf32>
    %c0_3 = arith.constant 0 : index
    %c0_4 = arith.constant 0 : index
    %3 = vector.load %arg3[%c0_3, %c0_4] : memref<1x128xf32, #tpu.memory_space<vmem>>, vector<1x128xf32>
    %4 = vector.broadcast %3 : vector<1x128xf32> to vector<128x128xf32>
    %5 = arith.addf %2, %4 : vector<128x128xf32>
    %c0_5 = arith.constant 0 : index
    %c0_6 = arith.constant 0 : index
    %6 = vector.load %arg4[%c0_5, %c0_6] : memref<128x128xf32, #tpu.memory_space<vmem>>, vector<128x128xf32>
    tpu.vector_store %arg4[%c0_5, %c0_6], %5 {strides = array<i32>} : memref<128x128xf32, #tpu.memory_space<vmem>>, vector<128x128xf32>,
    return
  }
  func.func @transform_0(%arg0: i32) -> (i32, i32) {
    %c0_i32 = arith.constant 0 : i32
    %c0_i32_0 = arith.constant 0 : i32
    return %arg0, %c0_i32 : i32, i32
  }
  func.func @transform_1(%arg0: i32) -> (i32, i32) {
    %c0_i32 = arith.constant 0 : i32
    %c0_i32_0 = arith.constant 0 : i32
    %c0_i32_1 = arith.constant 0 : i32
    return %c0_i32, %c0_i32_0 : i32, i32
  }
  func.func @transform_2(%arg0: i32) -> (i32, i32) {
    %c0_i32 = arith.constant 0 : i32
    %c0_i32_0 = arith.constant 0 : i32
    %c0_i32_1 = arith.constant 0 : i32
    return %c0_i32, %c0_i32_0 : i32, i32
  }
  func.func @transform_3(%arg0: i32) -> (i32, i32) {
    %c0_i32 = arith.constant 0 : i32
    %c0_i32_0 = arith.constant 0 : i32
    return %arg0, %c0_i32 : i32, i32
  }
}

</mosaic_0001>

<llo_original>
// kernel: tpu_custom_call.1
$region0: #{tpu_custom_call.1}
  #allocation0 [shape = 'u32[]', space=smem, size = 0x4, offset = 0x4, fixed_abs, tag = 'smem constant byte address 0x4 - core index']
  #allocation1 [shape = 'u32[144,128]{1,0:T(1,128)}', space=vmem, size = 0x12000, scoped, tag = 'internal scratch']
  %s0 = inlined_call_operand.vmem [shape: bf16[128,32], index: 0, kind: input, shape index: {}]
  %s1 = inlined_call_operand.vmem [shape: bf16[32,128], index: 1, kind: input, shape index: {}]
  %s2 = inlined_call_operand.vmem [shape: f32[1,128], index: 2, kind: input, shape index: {}]
  %s3 = inlined_call_operand.hbm [shape: f32[128,128], index: 3, kind: output, shape index: {}]
  %s4 = sld [smem:[#allocation0]]
  $region22: #{tpu_custom_call.1} parent=0
    _
  %s6 = ssub.s32 1, %s4
  %s7 = scalar_select 0, %s6, %s4
  $region1: #{tpu_custom_call.1} parent=0
    #allocation2 [shape = 'u8[65536]{0}', space=vmem, size = 0x10000, scoped, tag = 'output window, operand 0, single buffered']
    #allocation3 [shape = 's32[1]{0}', space=sflag, size = 0x4, scoped, tag = 'scoped memory for tpu_custom_call.1']
    %8 = vsyncpa [#allocation3], 0
    // Predicated region
    $region2: #{tpu_custom_call.1} parent=1 // pred_check
      _
    $region3: #{tpu_custom_call.1} parent=1 // pred_check_branch
      %10 = sbr.rel (0) target = $region5
    $region4: #{tpu_custom_call.1} parent=1 // pred_region
      _
    $region5: #{tpu_custom_call.1} parent=1 // pred_fallthru
      _
    // Predicated region
    $region6: #{tpu_custom_call.1} parent=1 // pred_check
      _
    $region7: #{tpu_custom_call.1} parent=1 // pred_check_branch
      %12 = sbr.rel (0) target = $region9
    $region8: #{tpu_custom_call.1} parent=1 // pred_region
      _
    $region9: #{tpu_custom_call.1} parent=1 // pred_fallthru
      _
    // Predicated region
    $region10: #{tpu_custom_call.1} parent=1 // pred_check
      _
    $region11: #{tpu_custom_call.1} parent=1 // pred_check_branch
      %14 = sbr.rel (0) target = $region13
    $region12: #{tpu_custom_call.1} parent=1 // pred_region
      _
    $region13: #{tpu_custom_call.1} parent=1 // pred_fallthru
      _
    %v16 = vld [vmem:[%s0] sm:$0xf]
    %v17 = vld [vmem:[%s0 + $0x4] sm:$0xf]
    %v18 = vld [vmem:[%s0 + $0x8] sm:$0xf]
    %v19 = vld [vmem:[%s0 + $0xc] sm:$0xf]
    %v20 = vld [vmem:[%s0 + $0x10] sm:$0xf]
    %v21 = vld [vmem:[%s0 + $0x14] sm:$0xf]
    %v22 = vld [vmem:[%s0 + $0x18] sm:$0xf]
    %v23 = vld [vmem:[%s0 + $0x1c] sm:$0xf]
    %v24 = vld [vmem:[%s0 + $0x20] sm:$0xf]
    %v25 = vld [vmem:[%s0 + $0x24] sm:$0xf]
    %v26 = vld [vmem:[%s0 + $0x28] sm:$0xf]
    %v27 = vld [vmem:[%s0 + $0x2c] sm:$0xf]
    %v28 = vld [vmem:[%s0 + $0x30] sm:$0xf]
    %v29 = vld [vmem:[%s0 + $0x34] sm:$0xf]
    %v30 = vld [vmem:[%s0 + $0x38] sm:$0xf]
    %v31 = vld [vmem:[%s0 + $0x3c] sm:$0xf]
    %v32 = vld [vmem:[%s1] sm:$0xf]
    %v33 = vld [vmem:[%s1 + $0x4] sm:$0xf]
    %v34 = vld [vmem:[%s1 + $0x8] sm:$0xf]
    %v35 = vld [vmem:[%s1 + $0xc] sm:$0xf]
    %v36 = vld [vmem:[%s2] sm:$0x1]
    %v38 = vlaneseq
    %v39 = vshrl.u32 %v38, 7
    %v40 = vsub.s32 0, %v39
    %v41 = vrot.slane %v36, %v40
    %v59 = vunpack.c.l.b16 %v16
    %v60 = vunpack.c.l.b16 %v17
    %v61 = vunpack.c.l.b16 %v18
    %v62 = vunpack.c.l.b16 %v19
    %v63 = vunpack.c.l.b16 %v20
    %v64 = vunpack.c.l.b16 %v21
    %v65 = vunpack.c.l.b16 %v22
    %v66 = vunpack.c.l.b16 %v23
    %v67 = vunpack.c.l.b16 %v24
    %v68 = vunpack.c.l.b16 %v25
    %v69 = vunpack.c.l.b16 %v26
    %v70 = vunpack.c.l.b16 %v27
    %v71 = vunpack.c.l.b16 %v28
    %v72 = vunpack.c.l.b16 %v29
    %v73 = vunpack.c.l.b16 %v30
    %v74 = vunpack.c.l.b16 %v31
    %v75 = vpack.c.b16 %v60, %v59
    %v76 = vpack.c.b16 %v62, %v61
    %v77 = vpack.c.b16 %v64, %v63
    %v78 = vpack.c.b16 %v66, %v65
    %v79 = vpack.c.b16 %v68, %v67
    %v80 = vpack.c.b16 %v70, %v69
    %v81 = vpack.c.b16 %v72, %v71
    %v82 = vpack.c.b16 %v74, %v73
    %v87 = vunpack.c.l.b16 %v32
    %v88 = vunpack.c.l.b16 %v33
    %v89 = vunpack.c.l.b16 %v34
    %v90 = vunpack.c.l.b16 %v35
    %v91 = vpack.c.b16 %v88, %v87
    %v92 = vpack.c.b16 %v90, %v89
    %vm95 = vcmask 261120
    %v97 = vsel %vm95, %v75, 0
    %v100 = vsel %vm95, %v76, 0
    %v103 = vsel %vm95, %v77, 0
    %v106 = vsel %vm95, %v78, 0
    %v109 = vsel %vm95, %v79, 0
    %v112 = vsel %vm95, %v80, 0
    %v115 = vsel %vm95, %v81, 0
    %v118 = vsel %vm95, %v82, 0
    %120 = vmatprep.subr.bf16.mxu0 0
    %121 = vmatpush1.bf16.msra.mxu0 %v91
    %122 = vmatprep.subr.bf16.mxu0 0
    %123 = vmatpush1.bf16.msra.mxu0 %v92
    %124 = vmatprep.subr.bf16.mxu0 0
    %125 = vmatpush1.bf16.msra.mxu0 0
    %126 = vmatprep.subr.bf16.mxu0 0
    %127 = vmatpush1.bf16.msra.mxu0 0
    %128 = vmatprep.subr.bf16.mxu0 0
    %129 = vmatpush1.bf16.msra.mxu0 0
    %130 = vmatprep.subr.bf16.mxu0 0
    %131 = vmatpush1.bf16.msra.mxu0 0
    %132 = vmatprep.subr.bf16.mxu0 0
    %133 = vmatpush1.bf16.msra.mxu0 0
    %134 = vmatprep.subr.bf16.mxu0 0
    %135 = vmatpush1.bf16.msra.mxu0 0
    %136 = vmatprep.subr.bf16.mxu0 0
    %137 = vmatpush1.bf16.msra.mxu0 0
    %138 = vmatprep.subr.bf16.mxu0 0
    %139 = vmatpush1.bf16.msra.mxu0 0
    %140 = vmatprep.subr.bf16.mxu0 0
    %141 = vmatpush1.bf16.msra.mxu0 0
    %142 = vmatprep.subr.bf16.mxu0 0
    %143 = vmatpush1.bf16.msra.mxu0 0
    %144 = vmatprep.subr.bf16.mxu0 0
    %145 = vmatpush1.bf16.msra.mxu0 0
    %146 = vmatprep.subr.bf16.mxu0 0
    %147 = vmatpush1.bf16.msra.mxu0 0
    %148 = vmatprep.subr.bf16.mxu0 0
    %149 = vmatpush1.bf16.msra.mxu0 0
    %150 = vmatprep.subr.bf16.mxu0 0
    %151 = vmatpush1.bf16.msra.mxu0 0
    %152 = vmatprep.mubr.bf16.mxu0 0
    %153 = vmatmul.mubr.bf16.gmra.mrb[0].mxu0 %v97
    %v154 = vpop.f32.mrb[0].mxu0
    %v155 = vadd.f32 %v41, %v154
    %v156 = vpop.f32.mrb[0].mxu0
    %v157 = vpop.f32.mrb[0].mxu0
    %v158 = vadd.f32 %v41, %v157
    %v159 = vpop.f32.mrb[0].mxu0
    %160 = vmatprep.mubr.bf16.mxu0 0
    %161 = vmatmul.mubr.bf16.gmra.mrb[0].mxu0 %v100
    %v162 = vpop.f32.mrb[0].mxu0
    %v163 = vadd.f32 %v41, %v162
    %v164 = vpop.f32.mrb[0].mxu0
    %v165 = vpop.f32.mrb[0].mxu0
    %v166 = vadd.f32 %v41, %v165
    %v167 = vpop.f32.mrb[0].mxu0
    %168 = vmatprep.mubr.bf16.mxu0 0
    %169 = vmatmul.mubr.bf16.gmra.mrb[0].mxu0 %v103
    %v170 = vpop.f32.mrb[0].mxu0
    %v171 = vadd.f32 %v41, %v170
    %v172 = vpop.f32.mrb[0].mxu0
    %v173 = vpop.f32.mrb[0].mxu0
    %v174 = vadd.f32 %v41, %v173
    %v175 = vpop.f32.mrb[0].mxu0
    %176 = vmatprep.mubr.bf16.mxu0 0
    %177 = vmatmul.mubr.bf16.gmra.mrb[0].mxu0 %v106
    %v178 = vpop.f32.mrb[0].mxu0
    %v179 = vadd.f32 %v41, %v178
    %v180 = vpop.f32.mrb[0].mxu0
    %v181 = vpop.f32.mrb[0].mxu0
    %v182 = vadd.f32 %v41, %v181
    %v183 = vpop.f32.mrb[0].mxu0
    %184 = vmatprep.mubr.bf16.mxu0 0
    %185 = vmatmul.mubr.bf16.gmra.mrb[0].mxu0 %v109
    %v186 = vpop.f32.mrb[0].mxu0
    %v187 = vadd.f32 %v41, %v186
    %v188 = vpop.f32.mrb[0].mxu0
    %v189 = vpop.f32.mrb[0].mxu0
    %v190 = vadd.f32 %v41, %v189
    %v191 = vpop.f32.mrb[0].mxu0
    %192 = vmatprep.mubr.bf16.mxu0 0
    %193 = vmatmul.mubr.bf16.gmra.mrb[0].mxu0 %v112
    %v194 = vpop.f32.mrb[0].mxu0
    %v195 = vadd.f32 %v41, %v194
    %v196 = vpop.f32.mrb[0].mxu0
    %v197 = vpop.f32.mrb[0].mxu0
    %v198 = vadd.f32 %v41, %v197
    %v199 = vpop.f32.mrb[0].mxu0
    %200 = vmatprep.mubr.bf16.mxu0 0
    %201 = vmatmul.mubr.bf16.gmra.mrb[0].mxu0 %v115
    %v202 = vpop.f32.mrb[0].mxu0
    %v203 = vadd.f32 %v41, %v202
    %v204 = vpop.f32.mrb[0].mxu0
    %v205 = vpop.f32.mrb[0].mxu0
    %v206 = vadd.f32 %v41, %v205
    %v207 = vpop.f32.mrb[0].mxu0
    %208 = vmatprep.mubr.bf16.mxu0 0
    %209 = vmatmul.mubr.bf16.gmra.mrb[0].mxu0 %v118
    %v210 = vpop.f32.mrb[0].mxu0
    %v211 = vadd.f32 %v41, %v210
    %v212 = vpop.f32.mrb[0].mxu0
    %v213 = vpop.f32.mrb[0].mxu0
    %v214 = vadd.f32 %v41, %v213
    %v215 = vpop.f32.mrb[0].mxu0
    %216 = vdwg.mxu0
    %217 = vst [vmem:[#allocation2] sm:$0xff] %v155
    %218 = vst [vmem:[#allocation2 + $0x8] sm:$0xff] %v158
    %219 = vst [vmem:[#allocation2 + $0x10] sm:$0xff] %v163
    %220 = vst [vmem:[#allocation2 + $0x18] sm:$0xff] %v166
    %221 = vst [vmem:[#allocation2 + $0x20] sm:$0xff] %v171
    %222 = vst [vmem:[#allocation2 + $0x28] sm:$0xff] %v174
    %223 = vst [vmem:[#allocation2 + $0x30] sm:$0xff] %v179
    %224 = vst [vmem:[#allocation2 + $0x38] sm:$0xff] %v182
    %225 = vst [vmem:[#allocation2 + $0x40] sm:$0xff] %v187
    %226 = vst [vmem:[#allocation2 + $0x48] sm:$0xff] %v190
    %227 = vst [vmem:[#allocation2 + $0x50] sm:$0xff] %v195
    %228 = vst [vmem:[#allocation2 + $0x58] sm:$0xff] %v198
    %229 = vst [vmem:[#allocation2 + $0x60] sm:$0xff] %v203
    %230 = vst [vmem:[#allocation2 + $0x68] sm:$0xff] %v206
    %231 = vst [vmem:[#allocation2 + $0x70] sm:$0xff] %v211
    %232 = vst [vmem:[#allocation2 + $0x78] sm:$0xff] %v214
    // Predicated region
    $region14: #{tpu_custom_call.1} parent=1 // pred_check
      _
    $region15: #{tpu_custom_call.1} parent=1 // pred_check_branch
      %234 = sbr.rel (0) target = $region17
    $region16: #{tpu_custom_call.1} parent=1 // pred_region
      %s236 = ssub.s32 2048, 2048
      %237 = vsyncadd [#allocation3], %s236
      %s238 = sshll.u32 [#allocation2], 4
      %s239 = int_to_ptr.vmem [resolvable:$true] %s238
      %244 = dma.vmem_to_hbm [thread:$0]  %s239, 2048, %s3, [#allocation3], 128, 128, 8
    $region17: #{tpu_custom_call.1} parent=1 // pred_fallthru
      _
    // Predicated region
    $region18: #{tpu_custom_call.1} parent=1 // pred_check
      _
    $region19: #{tpu_custom_call.1} parent=1 // pred_check_branch
      %246 = sbr.rel (0) target = $region21
    $region20: #{tpu_custom_call.1} parent=1 // pred_region
      %247 = dma.done [#allocation3], 2048
    $region21: #{tpu_custom_call.1} parent=1 // pred_fallthru
      _
    %248 = vsyncpa [#allocation3], 1

</llo_original>
